<compile_context>
chip_gen: v5e
topology: v5e:2x2
jax: 0.10.0
libtpu: 0.0.40
codegen_flags: <defaults>
</compile_context>

<pallas_src>
import jax
import jax.numpy as jnp
import numpy as np
from jax.experimental import pallas as pl
from jax.experimental.pallas import tpu as pltpu


def _leaky_relu(x, slope=0.2):
    return jnp.where(x > 0, x, slope * x)


def _round_up(a, m):
    return (a + m - 1) // m * m


def discriminator_kernel(x_ref,
                         w1_ref, b1_ref,
                         w2_ref, b2_ref,
                         w3_ref, b3_ref,
                         w4_ref, b4_ref,
                         o_ref):
    # Layer 1: F -> 2F  (bf16 MXU matmul, f32 accumulation; f32 epilogue)
    x = x_ref[...].astype(jnp.bfloat16)
    h = jnp.dot(x, w1_ref[...], preferred_element_type=jnp.float32) + b1_ref[...]
    h = _leaky_relu(h)

    # Layer 2: 2F -> F
    h = jnp.dot(h.astype(jnp.bfloat16), w2_ref[...],
                preferred_element_type=jnp.float32) + b2_ref[...]
    h = _leaky_relu(h)

    # Layer 3: F -> F/4
    h = jnp.dot(h.astype(jnp.bfloat16), w3_ref[...],
                preferred_element_type=jnp.float32) + b3_ref[...]
    h = _leaky_relu(h)

    # Layer 4: F/4 -> 1.  An N=1 vmatmul burns a full MXU pass for 1 lane of
    # utilization, so do a VPU broadcast-multiply + lane reduction instead.
    # b4 is a single f32 scalar read from SMEM.
    logits = jnp.sum(h * w4_ref[...], axis=-1, keepdims=True) + b4_ref[0]
    o_ref[...] = 1.0 / (1.0 + jnp.exp(-logits))


def discriminator_forward(x, params, *, block_b=128):
    """x: (B, ...) with prod(shape[1:]) == max_len.  Returns (B, 1) float32.

    block_b: batch tile (multiple of 128).  128 is safe on all generations;
    use 256 on v6e/v7x for large batches to match the 256-wide MXU."""
    assert block_b % 128 == 0
    B = x.shape[0]
    F = int(np.prod(x.shape[1:]))
    x2d = x.reshape(B, F)          # no wrapper dtype cast; kernel casts to bf16

    (w1, b1), (w2, b2), (w3, b3), (w4, b4) = params

    # Kernel-side layouts: bf16 (in, out) weights for layers 1-3, (1, out) f32
    # bias rows, a (1, F4) f32 row for layer 4 and a (1,) SMEM scalar bias.
    w1b, w2b, w3b = (w.astype(jnp.bfloat16) for w in (w1, w2, w3))
    b1r, b2r, b3r = (b.reshape(1, -1) for b in (b1, b2, b3))
    w4r = w4.reshape(1, -1).astype(jnp.float32)   # (1, F4)
    b4s = b4.reshape(1).astype(jnp.float32)       # (1,)  -> SMEM

    # Batch tiling; tiny batches collapse to one sublane-aligned tile.
    tb = min(block_b, _round_up(B, 8))
    b_pad = _round_up(B, tb)
    if b_pad != B:
        x2d = jnp.pad(x2d, ((0, b_pad - B), (0, 0)))
    num_tiles = b_pad // tb

    resident = lambda arr: pl.BlockSpec(arr.shape, lambda i: (0, 0))

    out = pl.pallas_call(
        discriminator_kernel,
        out_shape=jax.ShapeDtypeStruct((b_pad, 1), jnp.float32),
        grid_spec=pltpu.PrefetchScalarGridSpec(
            num_scalar_prefetch=0,
            grid=(num_tiles,),
            in_specs=[
                pl.BlockSpec((tb, F), lambda i: (i, 0)),   # x: streamed per tile
                resident(w1b), resident(b1r),              # weights stay in VMEM
                resident(w2b), resident(b2r),
                resident(w3b), resident(b3r),
                resident(w4r),
                pl.BlockSpec(memory_space=pltpu.MemorySpace.SMEM),  # b4 scalar
            ],
            out_specs=pl.BlockSpec((tb, 1), lambda i: (i, 0)),
        ),
        compiler_params=pltpu.CompilerParams(
            dimension_semantics=("parallel",),          # megacore on v7x
            vmem_limit_bytes=32 * 1024 * 1024,
        ),
    )(x2d, w1b, b1r, w2b, b2r, w3b, b3r, w4r, b4s)

    return out[:B]


def init_params(key, max_len):
    """PyTorch-style Linear init (uniform +/- 1/sqrt(fan_in)).

    Weights stored transposed as (in_features, out_features); biases (out,)."""
    f1 = max_len * 2
    f2 = max_len * 2 // 2
    f3 = max_len * 2 // 8
    dims = [(max_len, f1), (f1, f2), (f2, f3), (f3, 1)]
    params = []
    for fan_in, fan_out in dims:
        key, kw, kb = jax.random.split(key, 3)
        bound = 1.0 / np.sqrt(fan_in)
        w = jax.random.uniform(kw, (fan_in, fan_out), jnp.float32, -bound, bound)
        b = jax.random.uniform(kb, (fan_out,), jnp.float32, -bound, bound)
        params.append((w, b))
    return params


def reference_forward(x, params):
    """Pure-JAX reference mirroring the kernel math (bf16 MXU operands,
    f32 accumulation, f32 elementwise) of the PyTorch forward."""
    B = x.shape[0]
    h = x.reshape(B, -1).astype(jnp.float32)
    for w, b in params[:3]:
        h = jnp.dot(h.astype(jnp.bfloat16), w.astype(jnp.bfloat16),
                    preferred_element_type=jnp.float32) + b
        h = jnp.where(h > 0, h, 0.2 * h)
    w4, b4 = params[3]
    logits = h @ w4 + b4            # (B, 1)
    return 1.0 / (1.0 + jnp.exp(-logits))


if __name__ == "__main__":
    max_len = 64          # FC_linear_1 in_features == max_len
    batch = 2

    key = jax.random.PRNGKey(0)
    key, kx = jax.random.split(key)
    # inputs with shape (B, 4, 16): prod of trailing dims == max_len == 64
    x = jax.random.normal(kx, (batch, 4, 16), jnp.float32)

    params = init_params(key, max_len)

    out = discriminator_forward(x, params)
    out = jax.block_until_ready(out)

    ref = reference_forward(x, params)
    assert out.shape == (batch, 1), out.shape
    np.testing.assert_allclose(np.asarray(out), np.asarray(ref),
                               rtol=1e-3, atol=1e-4)

    print("KERNEL_OK")
</pallas_src>

<mosaic_0001>
module attributes {stable_mosaic.version = 11 : i64} {
  func.func @discriminator_kernel(%arg0: i32, %arg1: memref<8x64xf32, #tpu.memory_space<vmem>>, %arg2: memref<64x128xbf16, #tpu.memory_space<vmem>>, %arg3: memref<1x128xf32, #tpu.memory_space<vmem>>, %arg4: memref<128x64xbf16, #tpu.memory_space<vmem>>, %arg5: memref<1x64xf32, #tpu.memory_space<vmem>>, %arg6: memref<64x16xbf16, #tpu.memory_space<vmem>>, %arg7: memref<1x16xf32, #tpu.memory_space<vmem>>, %arg8: memref<1x16xf32, #tpu.memory_space<vmem>>, %arg9: memref<1xf32, #tpu.memory_space<smem>>, %arg10: memref<8x1xf32, #tpu.memory_space<vmem>>) attributes {dimension_semantics = [#tpu.dimension_semantics<parallel>], iteration_bounds = array<i64: 1>, scalar_prefetch = 0 : i64, scratch_operands = 0 : i64, tpu.core_type = #tpu.core_type<tc>, window_params = [{transform_indices = @transform_0, window_bounds = array<i64: 8, 64>}, {pipeline_mode = #tpu.pipeline_mode<synchronous>, transform_indices = @transform_1, window_bounds = array<i64: 64, 128>}, {pipeline_mode = #tpu.pipeline_mode<synchronous>, transform_indices = @transform_2, window_bounds = array<i64: 1, 128>}, {pipeline_mode = #tpu.pipeline_mode<synchronous>, transform_indices = @transform_3, window_bounds = array<i64: 128, 64>}, {pipeline_mode = #tpu.pipeline_mode<synchronous>, transform_indices = @transform_4, window_bounds = array<i64: 1, 64>}, {pipeline_mode = #tpu.pipeline_mode<synchronous>, transform_indices = @transform_5, window_bounds = array<i64: 64, 16>}, {pipeline_mode = #tpu.pipeline_mode<synchronous>, transform_indices = @transform_6, window_bounds = array<i64: 1, 16>}, {pipeline_mode = #tpu.pipeline_mode<synchronous>, transform_indices = @transform_7, window_bounds = array<i64: 1, 16>}, {transform_indices = @transform_8, window_bounds = array<i64: 1>}, {transform_indices = @transform_9, window_bounds = array<i64: 8, 1>}]} {
    %c0 = arith.constant 0 : index
    %c0_0 = arith.constant 0 : index
    %0 = vector.load %arg1[%c0, %c0_0] : memref<8x64xf32, #tpu.memory_space<vmem>>, vector<8x64xf32>
    %1 = arith.truncf %0 : vector<8x64xf32> to vector<8x64xbf16>
    %c0_1 = arith.constant 0 : index
    %c0_2 = arith.constant 0 : index
    %2 = vector.load %arg2[%c0_1, %c0_2] : memref<64x128xbf16, #tpu.memory_space<vmem>>, vector<64x128xbf16>
    %cst = arith.constant dense<0.000000e+00> : vector<8x128xf32>
    %3 = tpu.matmul %1, %2, %cst {dimension_numbers = #tpu.dot_dimension_numbers<[1], [0], [0], [1], [0, 0, 1, 1], [], []>} : vector<8x64xbf16>, vector<64x128xbf16>, vector<8x128xf32> -> vector<8x128xf32>
    %c0_3 = arith.constant 0 : index
    %c0_4 = arith.constant 0 : index
    %4 = vector.load %arg3[%c0_3, %c0_4] : memref<1x128xf32, #tpu.memory_space<vmem>>, vector<1x128xf32>
    %5 = vector.broadcast %4 : vector<1x128xf32> to vector<8x128xf32>
    %6 = arith.addf %3, %5 : vector<8x128xf32>
    %cst_5 = arith.constant 0.000000e+00 : f32
    %7 = vector.broadcast %cst_5 : f32 to vector<8x128xf32>
    %8 = arith.cmpf ogt, %6, %7 : vector<8x128xf32>
    %cst_6 = arith.constant 2.000000e-01 : f32
    %9 = vector.broadcast %cst_6 : f32 to vector<8x128xf32>
    %10 = arith.mulf %9, %6 : vector<8x128xf32>
    %11 = arith.select %8, %6, %10 : vector<8x128xi1>, vector<8x128xf32>
    %12 = arith.truncf %11 : vector<8x128xf32> to vector<8x128xbf16>
    %c0_7 = arith.constant 0 : index
    %c0_8 = arith.constant 0 : index
    %13 = vector.load %arg4[%c0_7, %c0_8] : memref<128x64xbf16, #tpu.memory_space<vmem>>, vector<128x64xbf16>
    %cst_9 = arith.constant dense<0.000000e+00> : vector<8x64xf32>
    %14 = tpu.matmul %12, %13, %cst_9 {dimension_numbers = #tpu.dot_dimension_numbers<[1], [0], [0], [1], [0, 0, 1, 1], [], []>} : vector<8x128xbf16>, vector<128x64xbf16>, vector<8x64xf32> -> vector<8x64xf32>
    %c0_10 = arith.constant 0 : index
    %c0_11 = arith.constant 0 : index
    %15 = vector.load %arg5[%c0_10, %c0_11] : memref<1x64xf32, #tpu.memory_space<vmem>>, vector<1x64xf32>
    %16 = vector.broadcast %15 : vector<1x64xf32> to vector<8x64xf32>
    %17 = arith.addf %14, %16 : vector<8x64xf32>
    %cst_12 = arith.constant 0.000000e+00 : f32
    %18 = vector.broadcast %cst_12 : f32 to vector<8x64xf32>
    %19 = arith.cmpf ogt, %17, %18 : vector<8x64xf32>
    %cst_13 = arith.constant 2.000000e-01 : f32
    %20 = vector.broadcast %cst_13 : f32 to vector<8x64xf32>
    %21 = arith.mulf %20, %17 : vector<8x64xf32>
    %22 = arith.select %19, %17, %21 : vector<8x64xi1>, vector<8x64xf32>
    %23 = arith.truncf %22 : vector<8x64xf32> to vector<8x64xbf16>
    %c0_14 = arith.constant 0 : index
    %c0_15 = arith.constant 0 : index
    %24 = vector.load %arg6[%c0_14, %c0_15] : memref<64x16xbf16, #tpu.memory_space<vmem>>, vector<64x16xbf16>
    %cst_16 = arith.constant dense<0.000000e+00> : vector<8x16xf32>
    %25 = tpu.matmul %23, %24, %cst_16 {dimension_numbers = #tpu.dot_dimension_numbers<[1], [0], [0], [1], [0, 0, 1, 1], [], []>} : vector<8x64xbf16>, vector<64x16xbf16>, vector<8x16xf32> -> vector<8x16xf32>
    %c0_17 = arith.constant 0 : index
    %c0_18 = arith.constant 0 : index
    %26 = vector.load %arg7[%c0_17, %c0_18] : memref<1x16xf32, #tpu.memory_space<vmem>>, vector<1x16xf32>
    %27 = vector.broadcast %26 : vector<1x16xf32> to vector<8x16xf32>
    %28 = arith.addf %25, %27 : vector<8x16xf32>
    %cst_19 = arith.constant 0.000000e+00 : f32
    %29 = vector.broadcast %cst_19 : f32 to vector<8x16xf32>
    %30 = arith.cmpf ogt, %28, %29 : vector<8x16xf32>
    %cst_20 = arith.constant 2.000000e-01 : f32
    %31 = vector.broadcast %cst_20 : f32 to vector<8x16xf32>
    %32 = arith.mulf %31, %28 : vector<8x16xf32>
    %33 = arith.select %30, %28, %32 : vector<8x16xi1>, vector<8x16xf32>
    %c0_21 = arith.constant 0 : index
    %c0_22 = arith.constant 0 : index
    %34 = vector.load %arg8[%c0_21, %c0_22] : memref<1x16xf32, #tpu.memory_space<vmem>>, vector<1x16xf32>
    %35 = vector.broadcast %34 : vector<1x16xf32> to vector<8x16xf32>
    %36 = arith.mulf %33, %35 : vector<8x16xf32>
    %cst_23 = arith.constant dense<0.000000e+00> : vector<8xf32>
    %37 = vector.multi_reduction <add>, %36, %cst_23 [1] : vector<8x16xf32> to vector<8xf32>
    %38 = vector.shape_cast %37 : vector<8xf32> to vector<8x1xf32>
    %c0_24 = arith.constant 0 : index
    %39 = memref.load %arg9[%c0_24] : memref<1xf32, #tpu.memory_space<smem>>
    %40 = vector.broadcast %39 : f32 to vector<8x1xf32>
    %41 = arith.addf %38, %40 : vector<8x1xf32>
    %cst_25 = arith.constant 0.000000e+00 : f32
    %42 = vector.broadcast %cst_25 : f32 to vector<8x1xf32>
    %43 = arith.subf %42, %41 : vector<8x1xf32>
    %44 = math.exp %43 : vector<8x1xf32>
    %cst_26 = arith.constant 1.000000e+00 : f32
    %45 = vector.broadcast %cst_26 : f32 to vector<8x1xf32>
    %46 = arith.addf %45, %44 : vector<8x1xf32>
    %cst_27 = arith.constant 1.000000e+00 : f32
    %47 = vector.broadcast %cst_27 : f32 to vector<8x1xf32>
    %48 = arith.divf %47, %46 : vector<8x1xf32>
    %c0_28 = arith.constant 0 : index
    %c0_29 = arith.constant 0 : index
    %49 = vector.load %arg10[%c0_28, %c0_29] : memref<8x1xf32, #tpu.memory_space<vmem>>, vector<8x1xf32>
    tpu.vector_store %arg10[%c0_28, %c0_29], %48 {strides = array<i32>} : memref<8x1xf32, #tpu.memory_space<vmem>>, vector<8x1xf32>,
    return
  }
  func.func @transform_0(%arg0: i32) -> (i32, i32) {
    %c0_i32 = arith.constant 0 : i32
    %c0_i32_0 = arith.constant 0 : i32
    return %arg0, %c0_i32 : i32, i32
  }
  func.func @transform_1(%arg0: i32) -> (i32, i32) {
    %c0_i32 = arith.constant 0 : i32
    %c0_i32_0 = arith.constant 0 : i32
    %c0_i32_1 = arith.constant 0 : i32
    return %c0_i32, %c0_i32_0 : i32, i32
  }
  func.func @transform_2(%arg0: i32) -> (i32, i32) {
    %c0_i32 = arith.constant 0 : i32
    %c0_i32_0 = arith.constant 0 : i32
    %c0_i32_1 = arith.constant 0 : i32
    return %c0_i32, %c0_i32_0 : i32, i32
  }
  func.func @transform_3(%arg0: i32) -> (i32, i32) {
    %c0_i32 = arith.constant 0 : i32
    %c0_i32_0 = arith.constant 0 : i32
    %c0_i32_1 = arith.constant 0 : i32
    return %c0_i32, %c0_i32_0 : i32, i32
  }
  func.func @transform_4(%arg0: i32) -> (i32, i32) {
    %c0_i32 = arith.constant 0 : i32
    %c0_i32_0 = arith.constant 0 : i32
    %c0_i32_1 = arith.constant 0 : i32
    return %c0_i32, %c0_i32_0 : i32, i32
  }
  func.func @transform_5(%arg0: i32) -> (i32, i32) {
    %c0_i32 = arith.constant 0 : i32
    %c0_i32_0 = arith.constant 0 : i32
    %c0_i32_1 = arith.constant 0 : i32
    return %c0_i32, %c0_i32_0 : i32, i32
  }
  func.func @transform_6(%arg0: i32) -> (i32, i32) {
    %c0_i32 = arith.constant 0 : i32
    %c0_i32_0 = arith.constant 0 : i32
    %c0_i32_1 = arith.constant 0 : i32
    return %c0_i32, %c0_i32_0 : i32, i32
  }
  func.func @transform_7(%arg0: i32) -> (i32, i32) {
    %c0_i32 = arith.constant 0 : i32
    %c0_i32_0 = arith.constant 0 : i32
    %c0_i32_1 = arith.constant 0 : i32
    return %c0_i32, %c0_i32_0 : i32, i32
  }
  func.func @transform_8(%arg0: i32) -> i32 {
    %c0_i32 = arith.constant 0 : i32
    %c0_i32_0 = arith.constant 0 : i32
    return %c0_i32 : i32
  }
  func.func @transform_9(%arg0: i32) -> (i32, i32) {
    %c0_i32 = arith.constant 0 : i32
    %c0_i32_0 = arith.constant 0 : i32
    return %arg0, %c0_i32 : i32, i32
  }
}

</mosaic_0001>

<llo_original>
// kernel: tpu_custom_call.1
$region0: #{tpu_custom_call.1}
  #allocation0 [shape = 'u32[]', space=smem, size = 0x4, offset = 0x4, fixed_abs, tag = 'smem constant byte address 0x4 - core index']
  #allocation1 [shape = 'u32[72,128]{1,0:T(1,128)}', space=vmem, size = 0x9000, scoped, tag = 'internal scratch']
  #allocation2 [shape = 'f32[1]{0:T(128)S(6)}', space=smem, size = 0x200, scoped, tag = 'scoped memory for tpu_custom_call.1']
  %s0 = inlined_call_operand.vmem [shape: f32[8,64], index: 0, kind: input, shape index: {}]
  %s1 = inlined_call_operand.vmem [shape: bf16[64,128], index: 1, kind: input, shape index: {}]
  %s2 = inlined_call_operand.vmem [shape: f32[1,128], index: 2, kind: input, shape index: {}]
  %s3 = inlined_call_operand.vmem [shape: bf16[128,64], index: 3, kind: input, shape index: {}]
  %s4 = inlined_call_operand.vmem [shape: f32[1,64], index: 4, kind: input, shape index: {}]
  %s5 = inlined_call_operand.vmem [shape: bf16[64,16], index: 5, kind: input, shape index: {}]
  %s6 = inlined_call_operand.vmem [shape: f32[1,16], index: 6, kind: input, shape index: {}]
  %s7 = inlined_call_operand.vmem [shape: f32[1,16], index: 7, kind: input, shape index: {}]
  %s8 = inlined_call_operand.<no memory space> [shape: f32[1], index: 8, kind: input, shape index: {}]
  %s9 = inlined_call_operand.vmem [shape: f32[8,1], index: 9, kind: output, shape index: {}]
  %s10 = sld [smem:[#allocation0]]
  $region46: #{tpu_custom_call.1} parent=0
    _
  %s12 = ssub.s32 1, %s10
  %s13 = scalar_select 0, %s12, %s10
  %14 = sst [smem:[#allocation2]] %s8
  // Predicated region
  $region2: #{tpu_custom_call.1} parent=0 // pred_check
    _
  $region3: #{tpu_custom_call.1} parent=0 // pred_check_branch
    %16 = sbr.rel (0) target = $region5
  $region4: #{tpu_custom_call.1} parent=0 // pred_region
    _
  $region5: #{tpu_custom_call.1} parent=0 // pred_fallthru
    _
  // Predicated region
  $region6: #{tpu_custom_call.1} parent=0 // pred_check
    _
  $region7: #{tpu_custom_call.1} parent=0 // pred_check_branch
    %18 = sbr.rel (0) target = $region9
  $region8: #{tpu_custom_call.1} parent=0 // pred_region
    _
  $region9: #{tpu_custom_call.1} parent=0 // pred_fallthru
    _
  // Predicated region
  $region10: #{tpu_custom_call.1} parent=0 // pred_check
    _
  $region11: #{tpu_custom_call.1} parent=0 // pred_check_branch
    %20 = sbr.rel (0) target = $region13
  $region12: #{tpu_custom_call.1} parent=0 // pred_region
    _
  $region13: #{tpu_custom_call.1} parent=0 // pred_fallthru
    _
  // Predicated region
  $region14: #{tpu_custom_call.1} parent=0 // pred_check
    _
  $region15: #{tpu_custom_call.1} parent=0 // pred_check_branch
    %22 = sbr.rel (0) target = $region17
  $region16: #{tpu_custom_call.1} parent=0 // pred_region
    _
  $region17: #{tpu_custom_call.1} parent=0 // pred_fallthru
    _
  // Predicated region
  $region18: #{tpu_custom_call.1} parent=0 // pred_check
    _
  $region19: #{tpu_custom_call.1} parent=0 // pred_check_branch
    %24 = sbr.rel (0) target = $region21
  $region20: #{tpu_custom_call.1} parent=0 // pred_region
    _
  $region21: #{tpu_custom_call.1} parent=0 // pred_fallthru
    _
  // Predicated region
  $region22: #{tpu_custom_call.1} parent=0 // pred_check
    _
  $region23: #{tpu_custom_call.1} parent=0 // pred_check_branch
    %26 = sbr.rel (0) target = $region25
  $region24: #{tpu_custom_call.1} parent=0 // pred_region
    _
  $region25: #{tpu_custom_call.1} parent=0 // pred_fallthru
    _
  // Predicated region
  $region26: #{tpu_custom_call.1} parent=0 // pred_check
    _
  $region27: #{tpu_custom_call.1} parent=0 // pred_check_branch
    %28 = sbr.rel (0) target = $region29
  $region28: #{tpu_custom_call.1} parent=0 // pred_region
    _
  $region29: #{tpu_custom_call.1} parent=0 // pred_fallthru
    _
  // Predicated region
  $region30: #{tpu_custom_call.1} parent=0 // pred_check
    _
  $region31: #{tpu_custom_call.1} parent=0 // pred_check_branch
    %30 = sbr.rel (0) target = $region33
  $region32: #{tpu_custom_call.1} parent=0 // pred_region
    _
  $region33: #{tpu_custom_call.1} parent=0 // pred_fallthru
    _
  // Predicated region
  $region34: #{tpu_custom_call.1} parent=0 // pred_check
    _
  $region35: #{tpu_custom_call.1} parent=0 // pred_check_branch
    %32 = sbr.rel (0) target = $region37
  $region36: #{tpu_custom_call.1} parent=0 // pred_region
    _
  $region37: #{tpu_custom_call.1} parent=0 // pred_fallthru
    _
  %v34 = vld [vmem:[%s0] sm:$0xff]
  %v35 = vpack.c.bf16 %v34, %v34
  %v36 = vld [vmem:[%s1] sm:$0xf]
  %v37 = vld [vmem:[%s1 + $0x4] sm:$0xf]
  %v38 = vld [vmem:[%s1 + $0x8] sm:$0xf]
  %v39 = vld [vmem:[%s1 + $0xc] sm:$0xf]
  %v40 = vld [vmem:[%s1 + $0x10] sm:$0xf]
  %v41 = vld [vmem:[%s1 + $0x14] sm:$0xf]
  %v42 = vld [vmem:[%s1 + $0x18] sm:$0xf]
  %v43 = vld [vmem:[%s1 + $0x1c] sm:$0xf]
  %v44 = vld [vmem:[%s2] sm:$0x1]
  %v46 = vperm.slane %v44, 0
  %v56 = vunpack.c.l.b16 %v36
  %v57 = vunpack.c.l.b16 %v37
  %v58 = vunpack.c.l.b16 %v38
  %v59 = vunpack.c.l.b16 %v39
  %v60 = vunpack.c.l.b16 %v40
  %v61 = vunpack.c.l.b16 %v41
  %v62 = vunpack.c.l.b16 %v42
  %v63 = vunpack.c.l.b16 %v43
  %v64 = vpack.c.b16 %v57, %v56
  %v65 = vpack.c.b16 %v59, %v58
  %v66 = vpack.c.b16 %v61, %v60
  %v67 = vpack.c.b16 %v63, %v62
  %vm72 = vcmask 523264
  %v74 = vsel %vm72, %v35, 0
  %76 = vmatpush.bf16.msra.mxu0 0
  %77 = vmatpush.bf16.msra.mxu0 0
  %78 = vmatpush.bf16.msra.mxu0 0
  %79 = vmatpush.bf16.msra.mxu0 0
  %80 = vmatpush.bf16.msra.mxu0 %v67
  %81 = vmatpush.bf16.msra.mxu0 %v66
  %82 = vmatpush.bf16.msra.mxu0 %v65
  %83 = vmatpush.bf16.msra.mxu0 %v64
  %84 = vmatmul.bf16.gmra.mxu0 %v74
  %v85 = vpop.f32.mrf.mxu0
  %v86 = vadd.f32 %v46, %v85
  %v87 = vpop.f32.mrf.mxu0
  %88 = vdwg.mxu0
  %vm89 = vcmp.gt.f32.partialorder %v86, 0.0
  %v90 = vmul.f32 %v86, 0.2
  %v91 = vsel %vm89, %v86, %v90
  %v92 = vpack.c.bf16 %v91, %v91
  %v93 = vld [vmem:[%s3] sm:$0xf]
  %v94 = vld [vmem:[%s3 + $0x4] sm:$0xf]
  %v95 = vld [vmem:[%s3 + $0x8] sm:$0xf]
  %v96 = vld [vmem:[%s3 + $0xc] sm:$0xf]
  %v97 = vld [vmem:[%s3 + $0x10] sm:$0xf]
  %v98 = vld [vmem:[%s3 + $0x14] sm:$0xf]
  %v99 = vld [vmem:[%s3 + $0x18] sm:$0xf]
  %v100 = vld [vmem:[%s3 + $0x1c] sm:$0xf]
  %v101 = vld [vmem:[%s3 + $0x20] sm:$0xf]
  %v102 = vld [vmem:[%s3 + $0x24] sm:$0xf]
  %v103 = vld [vmem:[%s3 + $0x28] sm:$0xf]
  %v104 = vld [vmem:[%s3 + $0x2c] sm:$0xf]
  %v105 = vld [vmem:[%s3 + $0x30] sm:$0xf]
  %v106 = vld [vmem:[%s3 + $0x34] sm:$0xf]
  %v107 = vld [vmem:[%s3 + $0x38] sm:$0xf]
  %v108 = vld [vmem:[%s3 + $0x3c] sm:$0xf]
  %v109 = vld [vmem:[%s4] sm:$0x1]
  %v111 = vperm.slane %v109, 0
  %v129 = vunpack.c.l.b16 %v93
  %v130 = vunpack.c.l.b16 %v94
  %v131 = vunpack.c.l.b16 %v95
  %v132 = vunpack.c.l.b16 %v96
  %v133 = vunpack.c.l.b16 %v97
  %v134 = vunpack.c.l.b16 %v98
  %v135 = vunpack.c.l.b16 %v99
  %v136 = vunpack.c.l.b16 %v100
  %v137 = vunpack.c.l.b16 %v101
  %v138 = vunpack.c.l.b16 %v102
  %v139 = vunpack.c.l.b16 %v103
  %v140 = vunpack.c.l.b16 %v104
  %v141 = vunpack.c.l.b16 %v105
  %v142 = vunpack.c.l.b16 %v106
  %v143 = vunpack.c.l.b16 %v107
  %v144 = vunpack.c.l.b16 %v108
  %v145 = vpack.c.b16 %v130, %v129
  %v146 = vpack.c.b16 %v132, %v131
  %v147 = vpack.c.b16 %v134, %v133
  %v148 = vpack.c.b16 %v136, %v135
  %v149 = vpack.c.b16 %v138, %v137
  %v150 = vpack.c.b16 %v140, %v139
  %v151 = vpack.c.b16 %v142, %v141
  %v152 = vpack.c.b16 %v144, %v143
  %161 = vmatpush.bf16.msra.mxu0 %v152
  %162 = vmatpush.bf16.msra.mxu0 %v151
  %163 = vmatpush.bf16.msra.mxu0 %v150
  %164 = vmatpush.bf16.msra.mxu0 %v149
  %165 = vmatpush.bf16.msra.mxu0 %v148
  %166 = vmatpush.bf16.msra.mxu0 %v147
  %167 = vmatpush.bf16.msra.mxu0 %v146
  %168 = vmatpush.bf16.msra.mxu0 %v145
  %169 = vmatmul.bf16.gmra.mxu0 %v92
  %v170 = vpop.f32.mrf.mxu0
  %v171 = vadd.f32 %v111, %v170
  %v172 = vpop.f32.mrf.mxu0
  %173 = vdwg.mxu0
  %vm174 = vcmp.gt.f32.partialorder %v171, 0.0
  %v175 = vmul.f32 %v171, 0.2
  %v176 = vsel %vm174, %v171, %v175
  %v177 = vpack.c.bf16 %v176, %v176
  %v178 = vld [vmem:[%s5] sm:$0xf]
  %v179 = vld [vmem:[%s5 + $0x4] sm:$0xf]
  %v180 = vld [vmem:[%s5 + $0x8] sm:$0xf]
  %v181 = vld [vmem:[%s5 + $0xc] sm:$0xf]
  %v182 = vld [vmem:[%s5 + $0x10] sm:$0xf]
  %v183 = vld [vmem:[%s5 + $0x14] sm:$0xf]
  %v184 = vld [vmem:[%s5 + $0x18] sm:$0xf]
  %v185 = vld [vmem:[%s5 + $0x1c] sm:$0xf]
  %v186 = vld [vmem:[%s6] sm:$0x1]
  %v188 = vperm.slane %v186, 0
  %v198 = vunpack.c.l.b16 %v178
  %v199 = vunpack.c.l.b16 %v179
  %v200 = vunpack.c.l.b16 %v180
  %v201 = vunpack.c.l.b16 %v181
  %v202 = vunpack.c.l.b16 %v182
  %v203 = vunpack.c.l.b16 %v183
  %v204 = vunpack.c.l.b16 %v184
  %v205 = vunpack.c.l.b16 %v185
  %v206 = vpack.c.b16 %v199, %v198
  %v207 = vpack.c.b16 %v201, %v200
  %v208 = vpack.c.b16 %v203, %v202
  %v209 = vpack.c.b16 %v205, %v204
  %v215 = vsel %vm72, %v177, 0
  %217 = vmatpush.bf16.msra.mxu0 0
  %218 = vmatpush.bf16.msra.mxu0 0
  %219 = vmatpush.bf16.msra.mxu0 0
  %220 = vmatpush.bf16.msra.mxu0 0
  %221 = vmatpush.bf16.msra.mxu0 %v209
  %222 = vmatpush.bf16.msra.mxu0 %v208
  %223 = vmatpush.bf16.msra.mxu0 %v207
  %224 = vmatpush.bf16.msra.mxu0 %v206
  %225 = vmatmul.bf16.gmra.mxu0 %v215
  %v226 = vpop.f32.mrf.mxu0
  %v227 = vadd.f32 %v188, %v226
  %v228 = vpop.f32.mrf.mxu0
  %229 = vdwg.mxu0
  %vm230 = vcmp.gt.f32.partialorder %v227, 0.0
  %v231 = vmul.f32 %v227, 0.2
  %v232 = vsel %vm230, %v227, %v231
  %v233 = vld [vmem:[%s7] sm:$0x1]
  %v235 = vperm.slane %v233, 0
  %v237 = vmul.f32 %v232, %v235
  %vm238 = vcmask 130048
  %v239 = vsel %vm238, %v237, 0.0
  %240 = vadd.xlane.f32.xlu0 %v239
  %v241 = vpop.xlane.xlu0 %240
  %s242 = sld [smem:[#allocation2]]
  %v243 = vstv %s242
  %v244 = vadd.f32 %v241, %v243
  %v245 = vsub.f32 0.0, %v244
  %v246 = vmul.f32 %v245, 1.442695
  %v247 = vpow.pop %v246
  %v248 = vadd.f32 %v247, 1.0
  %v249 = vrcp.pop %v248
  %v250 = vmul.f32 %v248, %v249
  %v251 = vsub.f32 1.0, %v250
  %v252 = vmul.f32 %v249, %v251
  %v253 = vadd.f32 %v249, %v252
  %vm254 = vweird.f32 %v248
  %vm255 = vweird.f32 %v249
  %vm256 = vmor %vm254, %vm255
  %v257 = vsel %vm256, %v249, %v253
  %v258 = vand.u32 2147483647, %v248
  %vm259 = vcmp.eq.f32.partialorder %v258, 8.507059e+37
  %v260 = vand.u32 %v248, 2147483648
  %v261 = vor.u32 1.1754944e-38, %v260
  %v262 = vsel %vm259, %v261, %v257
  %v263 = vmul.f32 1.0, %v262
  %vm264 = vcmask 7168
  %265 = vst.msk [vmem:[%s9] sm:$0xff] %vm264, %v263
  // Predicated region
  $region38: #{tpu_custom_call.1} parent=0 // pred_check
    _
  $region39: #{tpu_custom_call.1} parent=0 // pred_check_branch
    %267 = sbr.rel (0) target = $region41
  $region40: #{tpu_custom_call.1} parent=0 // pred_region
    _
  $region41: #{tpu_custom_call.1} parent=0 // pred_fallthru
    _
  // Predicated region
  $region42: #{tpu_custom_call.1} parent=0 // pred_check
    _
  $region43: #{tpu_custom_call.1} parent=0 // pred_check_branch
    %269 = sbr.rel (0) target = $region45
  $region44: #{tpu_custom_call.1} parent=0 // pred_region
    _
  $region45: #{tpu_custom_call.1} parent=0 // pred_fallthru
    _

</llo_original>
